<compile_context>
chip_gen: v6e
topology: v6e:2x2x1
jax: 0.10.0
libtpu: 0.0.40
codegen_flags: <defaults>
</compile_context>

<pallas_src>
import functools
import math

import jax
import jax.numpy as jnp
from jax import lax
from jax.experimental import pallas as pl
from jax.experimental.pallas import tpu as pltpu


# ----------------------------------------------------------------------------
# 1) Fused K/V projection:  kv = s2 @ [Wk; Wv]^T + [bk; bv]
# ----------------------------------------------------------------------------
def _kv_projection_kernel(x_ref, w_ref, b_ref, o_ref):
    # x: (tm, H), w: (2H, H) torch [out,in] layout, b: (1, 2H) -> o: (tm, 2H)
    y = lax.dot_general(
        x_ref[...], w_ref[...],
        dimension_numbers=(((1,), (1,)), ((), ())),
        preferred_element_type=jnp.float32)
    o_ref[...] = (y + b_ref[...]).astype(o_ref.dtype)


def kv_projection(x2d, w_kv, b_kv, *, tm=256):
    """x2d: [M, H]; w_kv: [2H, H]; b_kv: [2H] -> [M, 2H].

    Uses a cdiv grid with a partial trailing block (rows are independent, so
    out-of-bounds rows are simply masked on the write) — no jnp.pad copy.
    """
    M, H = x2d.shape
    N = w_kv.shape[0]
    tm_eff = M if M <= tm else tm              # tm is a multiple of 8
    grid = (pl.cdiv(M, tm_eff),)

    return pl.pallas_call(
        _kv_projection_kernel,
        out_shape=jax.ShapeDtypeStruct((M, N), x2d.dtype),
        grid_spec=pltpu.PrefetchScalarGridSpec(
            num_scalar_prefetch=0,
            grid=grid,
            in_specs=[
                pl.BlockSpec((tm_eff, H), lambda i: (i, 0)),   # activation rows
                pl.BlockSpec((N, H), lambda i: (0, 0)),        # stacked K/V weight
                pl.BlockSpec((1, N), lambda i: (0, 0)),        # stacked bias
            ],
            out_specs=pl.BlockSpec((tm_eff, N), lambda i: (i, 0)),
        ),
        compiler_params=pltpu.CompilerParams(
            dimension_semantics=("parallel",)),
        cost_estimate=pl.CostEstimate(
            flops=2 * M * H * N,
            transcendentals=0,
            bytes_accessed=(M * H + N * H + N + M * N) * x2d.dtype.itemsize),
    )(x2d, w_kv, b_kv.reshape(1, N))


# ----------------------------------------------------------------------------
# 2) Fused cross-attention: Q-proj + scores + map + softmax + probs@V
#    + output dense + residual + LayerNorm, gridded over (batch, S1 tiles).
# ----------------------------------------------------------------------------
def _fused_attention_kernel(s1_ref, kv_ref, mask_ref, wq_ref, bq_ref,
                            wo_ref, bo_ref, gamma_ref, beta_ref,
                            out_ref, amap_ref, ctx_scratch,
                            *, num_heads, head_dim, hidden, eps):
    s1 = s1_ref[0]                                       # (tq, H)
    kv = kv_ref[0]                                       # (S2, 2H)
    mask = mask_ref[0].astype(jnp.float32)               # (1, S2)

    # Q projection; the 1/sqrt(dh) score scale is folded into Wq/bq already.
    q = lax.dot_general(
        s1, wq_ref[...],
        dimension_numbers=(((1,), (1,)), ((), ())),
        preferred_element_type=jnp.float32) + bq_ref[...].astype(jnp.float32)

    k = kv[:, :hidden].astype(jnp.float32)               # (S2, H)
    v = kv[:, hidden:]                                    # (S2, H)

    # sum_h Q_h K_h^T == Q K^T : the pre-softmax head-mean map is one full-depth
    # MXU matmul instead of num_heads VALU accumulations over (tq, S2) tiles.
    qk_full = lax.dot_general(
        q, k, dimension_numbers=(((1,), (1,)), ((), ())),
        preferred_element_type=jnp.float32)               # (tq, S2)
    amap_ref[0] = (qk_full * (1.0 / num_heads) + mask).astype(amap_ref.dtype)

    # Per-head softmax(Q_h K_h^T + mask) @ V_h.  Each head's result is written
    # straight into the (tq, H) VMEM scratch at lane offset h*dh, so nothing
    # stays live across heads and there is no lane-dim concatenate.  Static
    # unrolled loop: num_heads is small (<= 16) and static slices are free.
    for h in range(num_heads):
        lo = h * head_dim
        scores = lax.dot_general(
            q[:, lo:lo + head_dim], k[:, lo:lo + head_dim],
            dimension_numbers=(((1,), (1,)), ((), ())),
            preferred_element_type=jnp.float32) + mask    # (tq, S2)
        m = jnp.max(scores, axis=-1, keepdims=True)
        e = jnp.exp(scores - m)
        # EUP approximate reciprocal instead of a VALU divide.
        p = e * pl.reciprocal(jnp.sum(e, axis=-1, keepdims=True), approx=True)
        ctx_scratch[:, lo:lo + head_dim] = lax.dot_general(
            p.astype(v.dtype), v[:, lo:lo + head_dim],
            dimension_numbers=(((1,), (0,)), ((), ())),
            preferred_element_type=jnp.float32)

    # Output dense + bias + residual + LayerNorm, fused (ctx never hits HBM).
    y = lax.dot_general(
        ctx_scratch[...], wo_ref[...].astype(jnp.float32),
        dimension_numbers=(((1,), (1,)), ((), ())),
        preferred_element_type=jnp.float32)
    y = y + bo_ref[...].astype(jnp.float32) + s1.astype(jnp.float32)
    u = jnp.mean(y, axis=-1, keepdims=True)
    d = y - u
    var = jnp.mean(d * d, axis=-1, keepdims=True)
    n = d * lax.rsqrt(var + eps)                          # EUP rsqrt, no divide
    out_ref[0] = (gamma_ref[...] * n + beta_ref[...]).astype(out_ref.dtype)


# ----------------------------------------------------------------------------
# Full module forward
# ----------------------------------------------------------------------------
def bert_cross_attention(s1, s2, mask, wq, bq, wk, bk, wv, bv, wo, bo,
                         gamma, beta, *, num_heads, eps=1e-12, tq=256,
                         tm_kv=256):
    """s1: [B,S1,H]; s2: [B,S2,H]; mask: [B,1,1,S2] additive (0 / -10000).
    Weights in torch Linear layout [out, in]. Returns (attention_output,
    attn_map)."""
    B, S1, H = s1.shape
    _, S2, _ = s2.shape
    dh = H // num_heads
    scale = 1.0 / math.sqrt(dh)

    # K and V from a single pass over s2 (stacked [2H, H] weight).
    w_kv = jnp.concatenate([wk, wv], axis=0)             # (2H, H)
    b_kv = jnp.concatenate([bk, bv], axis=0)             # (2H,)
    kv = kv_projection(s2.reshape(B * S2, H), w_kv, b_kv,
                       tm=tm_kv).reshape(B, S2, 2 * H)

    # Fold the 1/sqrt(dh) attention scale into the in-kernel Q projection
    # (one-time O(H^2) wrapper op, removes nh*S1*S2 per-tile multiplies).
    wq_s = (wq * scale).astype(wq.dtype)
    bq_s = (bq * scale).astype(bq.dtype).reshape(1, H)

    mask3 = mask.reshape(B, 1, S2)

    tq_eff = S1 if S1 <= tq else tq                      # tq is a multiple of 8
    grid = (B, pl.cdiv(S1, tq_eff))

    kernel = functools.partial(
        _fused_attention_kernel, num_heads=num_heads, head_dim=dh,
        hidden=H, eps=eps)

    out, amap = pl.pallas_call(
        kernel,
        out_shape=(jax.ShapeDtypeStruct((B, S1, H), s1.dtype),
                   jax.ShapeDtypeStruct((B, S1, S2), jnp.float32)),
        grid_spec=pltpu.PrefetchScalarGridSpec(
            num_scalar_prefetch=0,
            grid=grid,
            in_specs=[
                pl.BlockSpec((1, tq_eff, H), lambda b, i: (b, i, 0)),  # s1 tile
                pl.BlockSpec((1, S2, 2 * H), lambda b, i: (b, 0, 0)),  # fused K/V
                pl.BlockSpec((1, 1, S2), lambda b, i: (b, 0, 0)),      # mask
                # Grid-invariant parameters (kept resident across the grid).
                pl.BlockSpec((H, H), lambda b, i: (0, 0)),             # Wq*scale
                pl.BlockSpec((1, H), lambda b, i: (0, 0)),             # bq*scale
                pl.BlockSpec((H, H), lambda b, i: (0, 0)),             # Wo
                pl.BlockSpec((1, H), lambda b, i: (0, 0)),             # bo
                pl.BlockSpec((1, H), lambda b, i: (0, 0)),             # LN gamma
                pl.BlockSpec((1, H), lambda b, i: (0, 0)),             # LN beta
            ],
            out_specs=(pl.BlockSpec((1, tq_eff, H), lambda b, i: (b, i, 0)),
                       pl.BlockSpec((1, tq_eff, S2), lambda b, i: (b, i, 0))),
            scratch_shapes=[pltpu.VMEM((tq_eff, H), jnp.float32)],
        ),
        compiler_params=pltpu.CompilerParams(
            dimension_semantics=("parallel", "parallel")),
        cost_estimate=pl.CostEstimate(
            flops=B * (4 * S1 * H * H + 6 * S1 * S2 * H),
            transcendentals=B * (num_heads + 1) * S1 * S2,
            bytes_accessed=(2 * B * S1 * H + 2 * B * S2 * H + B * S2
                            + B * S1 * S2 + 2 * H * H + 4 * H) * 4),
    )(s1, kv, mask3, wq_s, bq_s, wo, bo.reshape(1, H),
      gamma.reshape(1, H), beta.reshape(1, H))
    return out, amap


# ----------------------------------------------------------------------------
# Pure-JAX reference (mirrors the PyTorch module, eval mode)
# ----------------------------------------------------------------------------
def reference(s1, s2, mask, wq, bq, wk, bk, wv, bv, wo, bo, gamma, beta, *,
              num_heads, eps):
    B, S1, H = s1.shape
    _, S2, _ = s2.shape
    dh = H // num_heads

    def lin(x, w, b):
        return jnp.einsum('bsh,nh->bsn', x, w) + b

    def split(x):
        return x.reshape(x.shape[0], x.shape[1], num_heads, dh).transpose(0, 2, 1, 3)

    qh = split(lin(s1, wq, bq))
    kh = split(lin(s2, wk, bk))
    vh = split(lin(s2, wv, bv))

    scores = jnp.einsum('bhqd,bhkd->bhqk', qh, kh) * (1.0 / math.sqrt(dh))
    scores = scores + mask
    attn_map = jnp.mean(scores, axis=1)
    probs = jax.nn.softmax(scores, axis=-1)
    ctx = jnp.einsum('bhqk,bhkd->bhqd', probs, vh)
    ctx = ctx.transpose(0, 2, 1, 3).reshape(B, S1, H)

    y = lin(ctx, wo, bo) + s1
    u = y.mean(-1, keepdims=True)
    s = ((y - u) ** 2).mean(-1, keepdims=True)
    out = gamma * (y - u) / jnp.sqrt(s + eps) + beta
    return out, attn_map


if __name__ == "__main__":
    B, S1, S2, H, NH = 2, 8, 16, 32, 4
    eps = 1e-12

    key = jax.random.PRNGKey(0)
    keys = jax.random.split(key, 14)

    s1 = jax.random.normal(keys[0], (B, S1, H), dtype=jnp.float32)
    s2 = jax.random.normal(keys[1], (B, S2, H), dtype=jnp.float32)

    # BERT-style additive mask [B, 1, 1, S2]: 0 for valid keys, -10000 for pad.
    lens = jnp.array([S2, S2 - 5])
    valid = jnp.arange(S2)[None, :] < lens[:, None]
    mask = jnp.where(valid, 0.0, -10000.0).astype(jnp.float32).reshape(B, 1, 1, S2)

    bound = 1.0 / math.sqrt(H)

    def init_linear(kw, kb):
        w = jax.random.uniform(kw, (H, H), minval=-bound, maxval=bound,
                               dtype=jnp.float32)
        b = jax.random.uniform(kb, (H,), minval=-bound, maxval=bound,
                               dtype=jnp.float32)
        return w, b

    wq, bq = init_linear(keys[2], keys[3])
    wk, bk = init_linear(keys[4], keys[5])
    wv, bv = init_linear(keys[6], keys[7])
    wo, bo = init_linear(keys[8], keys[9])
    gamma = jax.random.uniform(keys[10], (H,), minval=0.5, maxval=1.5,
                               dtype=jnp.float32)
    beta = jax.random.uniform(keys[11], (H,), minval=-0.5, maxval=0.5,
                              dtype=jnp.float32)

    out, amap = bert_cross_attention(
        s1, s2, mask, wq, bq, wk, bk, wv, bv, wo, bo, gamma, beta,
        num_heads=NH, eps=eps)
    out, amap = jax.block_until_ready((out, amap))

    ref_out, ref_amap = reference(
        s1, s2, mask, wq, bq, wk, bk, wv, bv, wo, bo, gamma, beta,
        num_heads=NH, eps=eps)

    assert out.shape == (B, S1, H)
    assert amap.shape == (B, S1, S2)
    # Output tolerance is slightly loosened because the softmax normalization
    # uses the EUP approximate reciprocal (pl.reciprocal(approx=True)).
    assert jnp.allclose(out, ref_out, atol=5e-3, rtol=5e-3), "output mismatch"
    assert jnp.allclose(amap, ref_amap, atol=1e-3, rtol=1e-4), "attn_map mismatch"

    print("KERNEL_OK")
</pallas_src>

<mosaic_0001>
module attributes {stable_mosaic.version = 11 : i64} {
  func.func @_kv_projection_kernel(%arg0: i32, %arg1: memref<32x32xf32, #tpu.memory_space<vmem>>, %arg2: memref<64x32xf32, #tpu.memory_space<vmem>>, %arg3: memref<1x64xf32, #tpu.memory_space<vmem>>, %arg4: memref<32x64xf32, #tpu.memory_space<vmem>>) attributes {dimension_semantics = [#tpu.dimension_semantics<parallel>], iteration_bounds = array<i64: 1>, scalar_prefetch = 0 : i64, scratch_operands = 0 : i64, tpu.core_type = #tpu.core_type<tc>, window_params = [{transform_indices = @transform_0, window_bounds = array<i64: 32, 32>}, {pipeline_mode = #tpu.pipeline_mode<synchronous>, transform_indices = @transform_1, window_bounds = array<i64: 64, 32>}, {pipeline_mode = #tpu.pipeline_mode<synchronous>, transform_indices = @transform_2, window_bounds = array<i64: 1, 64>}, {transform_indices = @transform_3, window_bounds = array<i64: 32, 64>}]} {
    %c0 = arith.constant 0 : index
    %c0_0 = arith.constant 0 : index
    %0 = vector.load %arg1[%c0, %c0_0] : memref<32x32xf32, #tpu.memory_space<vmem>>, vector<32x32xf32>
    %c0_1 = arith.constant 0 : index
    %c0_2 = arith.constant 0 : index
    %1 = vector.load %arg2[%c0_1, %c0_2] : memref<64x32xf32, #tpu.memory_space<vmem>>, vector<64x32xf32>
    %cst = arith.constant dense<0.000000e+00> : vector<32x64xf32>
    %2 = tpu.matmul %0, %1, %cst {dimension_numbers = #tpu.dot_dimension_numbers<[1], [1], [0], [0], [0, 0, 1, 0], [], []>} : vector<32x32xf32>, vector<64x32xf32>, vector<32x64xf32> -> vector<32x64xf32>
    %c0_3 = arith.constant 0 : index
    %c0_4 = arith.constant 0 : index
    %3 = vector.load %arg3[%c0_3, %c0_4] : memref<1x64xf32, #tpu.memory_space<vmem>>, vector<1x64xf32>
    %4 = vector.broadcast %3 : vector<1x64xf32> to vector<32x64xf32>
    %5 = arith.addf %2, %4 : vector<32x64xf32>
    %c0_5 = arith.constant 0 : index
    %c0_6 = arith.constant 0 : index
    %6 = vector.load %arg4[%c0_5, %c0_6] : memref<32x64xf32, #tpu.memory_space<vmem>>, vector<32x64xf32>
    tpu.vector_store %arg4[%c0_5, %c0_6], %5 {strides = array<i32>} : memref<32x64xf32, #tpu.memory_space<vmem>>, vector<32x64xf32>,
    return
  }
  func.func @transform_0(%arg0: i32) -> (i32, i32) {
    %c0_i32 = arith.constant 0 : i32
    %c0_i32_0 = arith.constant 0 : i32
    return %arg0, %c0_i32 : i32, i32
  }
  func.func @transform_1(%arg0: i32) -> (i32, i32) {
    %c0_i32 = arith.constant 0 : i32
    %c0_i32_0 = arith.constant 0 : i32
    %c0_i32_1 = arith.constant 0 : i32
    return %c0_i32, %c0_i32_0 : i32, i32
  }
  func.func @transform_2(%arg0: i32) -> (i32, i32) {
    %c0_i32 = arith.constant 0 : i32
    %c0_i32_0 = arith.constant 0 : i32
    %c0_i32_1 = arith.constant 0 : i32
    return %c0_i32, %c0_i32_0 : i32, i32
  }
  func.func @transform_3(%arg0: i32) -> (i32, i32) {
    %c0_i32 = arith.constant 0 : i32
    %c0_i32_0 = arith.constant 0 : i32
    return %arg0, %c0_i32 : i32, i32
  }
}

</mosaic_0001>

<llo_original>
// kernel: tpu_custom_call.1
$region0: #{tpu_custom_call.1}
  #allocation0 [shape = 'u32[]', space=smem, size = 0x4, offset = 0x4, fixed_abs, tag = 'smem constant byte address 0x4 - core index']
  #allocation1 [shape = 'u32[144,128]{1,0:T(1,128)}', space=vmem, size = 0x12000, scoped, tag = 'internal scratch']
  %s0 = inlined_call_operand.vmem [shape: f32[32,32], index: 0, kind: input, shape index: {}]
  %s1 = inlined_call_operand.vmem [shape: f32[64,32], index: 1, kind: input, shape index: {}]
  %s2 = inlined_call_operand.vmem [shape: f32[1,64], index: 2, kind: input, shape index: {}]
  %s3 = inlined_call_operand.hbm [shape: f32[32,64], index: 3, kind: output, shape index: {}]
  %s4 = sld [smem:[#allocation0]]
  $region22: #{tpu_custom_call.1} parent=0
    _
  %s6 = ssub.s32 1, %s4
  %s7 = scalar_select 0, %s6, %s4
  $region1: #{tpu_custom_call.1} parent=0
    #allocation2 [shape = 'u8[16384]{0}', space=vmem, size = 0x4000, scoped, tag = 'output window, operand 0, single buffered']
    #allocation3 [shape = 's32[1]{0}', space=sflag, size = 0x4, scoped, tag = 'scoped memory for tpu_custom_call.1']
    %8 = vsyncpa [#allocation3], 0
    // Predicated region
    $region2: #{tpu_custom_call.1} parent=1 // pred_check
      _
    $region3: #{tpu_custom_call.1} parent=1 // pred_check_branch
      %10 = sbr.rel (0) target = $region5
    $region4: #{tpu_custom_call.1} parent=1 // pred_region
      _
    $region5: #{tpu_custom_call.1} parent=1 // pred_fallthru
      _
    // Predicated region
    $region6: #{tpu_custom_call.1} parent=1 // pred_check
      _
    $region7: #{tpu_custom_call.1} parent=1 // pred_check_branch
      %12 = sbr.rel (0) target = $region9
    $region8: #{tpu_custom_call.1} parent=1 // pred_region
      _
    $region9: #{tpu_custom_call.1} parent=1 // pred_fallthru
      _
    // Predicated region
    $region10: #{tpu_custom_call.1} parent=1 // pred_check
      _
    $region11: #{tpu_custom_call.1} parent=1 // pred_check_branch
      %14 = sbr.rel (0) target = $region13
    $region12: #{tpu_custom_call.1} parent=1 // pred_region
      _
    $region13: #{tpu_custom_call.1} parent=1 // pred_fallthru
      _
    %v15 = vld [vmem:[%s0] sm:$0xff]
    %v16 = vld [vmem:[%s0 + $0x8] sm:$0xff]
    %v17 = vld [vmem:[%s0 + $0x10] sm:$0xff]
    %v18 = vld [vmem:[%s0 + $0x18] sm:$0xff]
    %v19 = vld [vmem:[%s1] sm:$0xff]
    %v20 = vld [vmem:[%s1 + $0x8] sm:$0xff]
    %v21 = vld [vmem:[%s1 + $0x10] sm:$0xff]
    %v22 = vld [vmem:[%s1 + $0x18] sm:$0xff]
    %v23 = vld [vmem:[%s1 + $0x20] sm:$0xff]
    %v24 = vld [vmem:[%s1 + $0x28] sm:$0xff]
    %v25 = vld [vmem:[%s1 + $0x30] sm:$0xff]
    %v26 = vld [vmem:[%s1 + $0x38] sm:$0xff]
    %v27 = vld [vmem:[%s2] sm:$0x1]
    %v29 = vlaneseq
    %v30 = vshrl.u32 %v29, 7
    %v31 = vsub.s32 0, %v30
    %v32 = vrot.slane %v27, %v31
    %vm34 = vcmask 261120
    %v36 = vsel %vm34, %v15, 0
    %v39 = vsel %vm34, %v16, 0
    %v42 = vsel %vm34, %v17, 0
    %v45 = vsel %vm34, %v18, 0
    %v48 = vsel %vm34, %v19, 0
    %v51 = vsel %vm34, %v20, 0
    %v54 = vsel %vm34, %v21, 0
    %v57 = vsel %vm34, %v22, 0
    %v60 = vsel %vm34, %v23, 0
    %v63 = vsel %vm34, %v24, 0
    %v66 = vsel %vm34, %v25, 0
    %v69 = vsel %vm34, %v26, 0
    %71 = vmatprep.subr.mxu0 0.0
    %72 = vmatpush1.xpose.msra.mxu0 0.0
    %73 = vmatprep.subr.mxu0 0.0
    %74 = vmatpush1.xpose.msra.mxu0 0.0
    %75 = vmatprep.subr.mxu0 0.0
    %76 = vmatpush1.xpose.msra.mxu0 0.0
    %77 = vmatprep.subr.mxu0 0.0
    %78 = vmatpush1.xpose.msra.mxu0 0.0
    %79 = vmatprep.subr.mxu0 0.0
    %80 = vmatpush1.xpose.msra.mxu0 0.0
    %81 = vmatprep.subr.mxu0 0.0
    %82 = vmatpush1.xpose.msra.mxu0 0.0
    %83 = vmatprep.subr.mxu0 0.0
    %84 = vmatpush1.xpose.msra.mxu0 0.0
    %85 = vmatprep.subr.mxu0 0.0
    %86 = vmatpush1.xpose.msra.mxu0 0.0
    %87 = vmatprep.subr.mxu0 0.0
    %88 = vmatpush1.xpose.msra.mxu0 %v69
    %89 = vmatprep.subr.mxu0 0.0
    %90 = vmatpush1.xpose.msra.mxu0 %v66
    %91 = vmatprep.subr.mxu0 0.0
    %92 = vmatpush1.xpose.msra.mxu0 %v63
    %93 = vmatprep.subr.mxu0 0.0
    %94 = vmatpush1.xpose.msra.mxu0 %v60
    %95 = vmatprep.subr.mxu0 0.0
    %96 = vmatpush1.xpose.msra.mxu0 %v57
    %97 = vmatprep.subr.mxu0 0.0
    %98 = vmatpush1.xpose.msra.mxu0 %v54
    %99 = vmatprep.subr.mxu0 0.0
    %100 = vmatpush1.xpose.msra.mxu0 %v51
    %101 = vmatprep.subr.mxu0 0.0
    %102 = vmatpush1.xpose.msra.mxu0 %v48
    %103 = vmatprep.subr.mxu0 0.0
    %104 = vmatpush2.xpose.msra.mxu0 0.0
    %105 = vmatprep.subr.mxu0 0.0
    %106 = vmatpush2.xpose.msra.mxu0 0.0
    %107 = vmatprep.subr.mxu0 0.0
    %108 = vmatpush2.xpose.msra.mxu0 0.0
    %109 = vmatprep.subr.mxu0 0.0
    %110 = vmatpush2.xpose.msra.mxu0 0.0
    %111 = vmatprep.subr.mxu0 0.0
    %112 = vmatpush2.xpose.msra.mxu0 0.0
    %113 = vmatprep.subr.mxu0 0.0
    %114 = vmatpush2.xpose.msra.mxu0 0.0
    %115 = vmatprep.subr.mxu0 0.0
    %116 = vmatpush2.xpose.msra.mxu0 0.0
    %117 = vmatprep.subr.mxu0 0.0
    %118 = vmatpush2.xpose.msra.mxu0 0.0
    %119 = vmatprep.subr.mxu0 0.0
    %120 = vmatpush2.xpose.msra.mxu0 0.0
    %121 = vmatprep.subr.mxu0 0.0
    %122 = vmatpush2.xpose.msra.mxu0 0.0
    %123 = vmatprep.subr.mxu0 0.0
    %124 = vmatpush2.xpose.msra.mxu0 0.0
    %125 = vmatprep.subr.mxu0 0.0
    %126 = vmatpush2.xpose.msra.mxu0 0.0
    %127 = vmatprep.subr.mxu0 0.0
    %128 = vmatpush2.xpose.msra.mxu0 0.0
    %129 = vmatprep.subr.mxu0 0.0
    %130 = vmatpush2.xpose.msra.mxu0 0.0
    %131 = vmatprep.subr.mxu0 0.0
    %132 = vmatpush2.xpose.msra.mxu0 0.0
    %133 = vmatprep.subr.mxu0 0.0
    %134 = vmatpush2.xpose.msra.mxu0 0.0
    %135 = vmatprep.mubr.f32.mxu0 0.0
    %136 = vmatmul.mubr.f32.gmra.mxu0 %v36
    %v137 = vpop.f32.mrf.mxu0
    %v138 = vadd.f32 %v32, %v137
    %v139 = vpop.f32.mrf.mxu0
    %140 = vmatprep.mubr.f32.mxu0 0.0
    %141 = vmatmul.mubr.f32.gmra.mxu0 %v39
    %v142 = vpop.f32.mrf.mxu0
    %v143 = vadd.f32 %v32, %v142
    %v144 = vpop.f32.mrf.mxu0
    %145 = vmatprep.mubr.f32.mxu0 0.0
    %146 = vmatmul.mubr.f32.gmra.mxu0 %v42
    %v147 = vpop.f32.mrf.mxu0
    %v148 = vadd.f32 %v32, %v147
    %v149 = vpop.f32.mrf.mxu0
    %150 = vmatprep.mubr.f32.mxu0 0.0
    %151 = vmatmul.mubr.f32.gmra.mxu0 %v45
    %v152 = vpop.f32.mrf.mxu0
    %v153 = vadd.f32 %v32, %v152
    %v154 = vpop.f32.mrf.mxu0
    %155 = vdwg.mxu0
    %vm156 = vcmask 523264
    %157 = vst.msk [vmem:[#allocation2] sm:$0xff] %vm156, %v138
    %158 = vst.msk [vmem:[#allocation2 + $0x8] sm:$0xff] %vm156, %v143
    %159 = vst.msk [vmem:[#allocation2 + $0x10] sm:$0xff] %vm156, %v148
    %160 = vst.msk [vmem:[#allocation2 + $0x18] sm:$0xff] %vm156, %v153
    // Predicated region
    $region14: #{tpu_custom_call.1} parent=1 // pred_check
      _
    $region15: #{tpu_custom_call.1} parent=1 // pred_check_branch
      %162 = sbr.rel (0) target = $region17
    $region16: #{tpu_custom_call.1} parent=1 // pred_region
      %s164 = ssub.s32 512, 512
      %165 = vsyncadd [#allocation3], %s164
      %s166 = sshll.u32 [#allocation2], 4
      %s167 = int_to_ptr.vmem [resolvable:$true] %s166
      %172 = dma.vmem_to_hbm [thread:$0]  %s167, 512, %s3, [#allocation3], 128, 128, 8
    $region17: #{tpu_custom_call.1} parent=1 // pred_fallthru
      _
    // Predicated region
    $region18: #{tpu_custom_call.1} parent=1 // pred_check
      _
    $region19: #{tpu_custom_call.1} parent=1 // pred_check_branch
      %174 = sbr.rel (0) target = $region21
    $region20: #{tpu_custom_call.1} parent=1 // pred_region
      %175 = dma.done [#allocation3], 512
    $region21: #{tpu_custom_call.1} parent=1 // pred_fallthru
      _
    %176 = vsyncpa [#allocation3], 1

</llo_original>
